<compile_context>
chip_gen: v7x
topology: tpu7x:2x2x1
jax: 0.10.0
libtpu: 0.0.40
codegen_flags: <defaults>
</compile_context>

<pallas_src>
import math
from functools import partial

import jax
import jax.numpy as jnp
from jax import lax
from jax.experimental import pallas as pl
from jax.experimental.pallas import tpu as pltpu

_VMEM_LIMIT = 32 * 1024 * 1024  # explicit scoped-VMEM limit (safe on v5e/v6e/v7x)


def _round_up(a, m):
    return (a + m - 1) // m * m


# ----------------------------------------------------------------------------
# Linear projection kernel: fixed-size row/column tiles, 2-D parallel grid.
# ----------------------------------------------------------------------------
def _linear_kernel(x_ref, w_ref, b_ref, o_ref):
    # x: (tm, K), w: (K, tn), b: (1, tn) -> o: (tm, tn); f32 MXU accumulation.
    acc = jnp.dot(x_ref[...], w_ref[...], preferred_element_type=jnp.float32)
    o_ref[...] = (acc + b_ref[...]).astype(o_ref.dtype)


def linear_pallas(x, w, b, *, tm=256, tn=256):
    """y = x @ w + b with row tiles tm and output-column tiles tn.
    M and Nout are padded up to tile multiples (cheap vs. the matmul) so tiles
    never degenerate (e.g. M = B*197) and all blocks are (8,128)-legal."""
    M, K = x.shape
    Kw, Nout = w.shape
    assert K == Kw
    tm = min(tm, _round_up(M, 8))
    tn = min(tn, _round_up(Nout, 128))
    Mp, Np = _round_up(M, tm), _round_up(Nout, tn)
    if Mp != M:
        x = jnp.pad(x, ((0, Mp - M), (0, 0)))
    if Np != Nout:
        w = jnp.pad(w, ((0, 0), (0, Np - Nout)))
        b = jnp.pad(b, (0, Np - Nout))

    out = pl.pallas_call(
        _linear_kernel,
        out_shape=jax.ShapeDtypeStruct((Mp, Np), x.dtype),
        grid=(Mp // tm, Np // tn),
        in_specs=[
            pl.BlockSpec((tm, K), lambda i, j: (i, 0)),
            pl.BlockSpec((K, tn), lambda i, j: (0, j)),
            pl.BlockSpec((1, tn), lambda i, j: (0, j)),
        ],
        out_specs=pl.BlockSpec((tm, tn), lambda i, j: (i, j)),
        compiler_params=pltpu.CompilerParams(
            dimension_semantics=("parallel", "parallel"),
            vmem_limit_bytes=_VMEM_LIMIT,
        ),
    )(x, w, b.reshape(1, -1))

    if Mp != M or Np != Nout:
        out = out[:M, :Nout]
    return out


# ----------------------------------------------------------------------------
# Taylor attention core
# ----------------------------------------------------------------------------
def _attn_heads(q_all, k_all, v_all, *, head_dim, coeffs, apply_relu, ew_dtype):
    """q_all / k_all / v_all: (N, n*head_dim) head-major slabs.
    Returns the normalized attention output (N, n*head_dim)."""
    N = q_all.shape[0]
    n = q_all.shape[1] // head_dim
    ones_col = jnp.ones((N, 1), v_all.dtype)            # hoisted out of the loop
    rev = coeffs[::-1]                                   # [c_order, ..., c_0], scale folded
    outs = []
    for h in range(n):                                   # small static unroll (<= heads/group)
        lo, hi = h * head_dim, (h + 1) * head_dim
        # raw scores q @ k^T: contract last dims (no k transpose), f32 MXU acc.
        s = lax.dot_general(
            q_all[:, lo:hi], k_all[:, lo:hi],
            dimension_numbers=(((1,), (1,)), ((), ())),
            preferred_element_type=jnp.float32,
        ).astype(ew_dtype)                               # Horner in bf16 when inputs are bf16

        # Horner evaluation of sum_i (scale*s_raw)^i / i!  (scale folded into coeffs)
        attn = s * rev[0] + rev[1]
        for c in rev[2:]:
            attn = attn * s + c
        if apply_relu:                                   # only needed for odd order
            attn = jnp.maximum(attn, 0.0)

        # Fused row-sum: append a ones column to v so the denominator comes out
        # of the same PV matmul (rides MXU slack instead of an XLU reduction).
        v_aug = jnp.concatenate([v_all[:, lo:hi], ones_col], axis=-1)
        pv = jnp.dot(attn.astype(v_all.dtype), v_aug,
                     preferred_element_type=jnp.float32)      # (N, head_dim + 1) f32
        inv = pl.reciprocal(pv[:, head_dim:head_dim + 1], approx=True)
        outs.append(pv[:, :head_dim] * inv)

    out = outs[0] if n == 1 else jnp.concatenate(outs, axis=-1)
    return out


def _attn_kernel_grouped(q_ref, k_ref, v_ref, o_ref, *,
                         head_dim, coeffs, apply_relu, ew_dtype):
    # q/k/v refs: (1, N, W) lane-aligned head-group column slabs of qkv.
    out = _attn_heads(q_ref[0], k_ref[0], v_ref[0], head_dim=head_dim,
                      coeffs=coeffs, apply_relu=apply_relu, ew_dtype=ew_dtype)
    o_ref[0] = out.astype(o_ref.dtype)                   # single lane-dense store


def _attn_kernel_fused(qkv_ref, o_ref, *, head_dim, coeffs, apply_relu, ew_dtype):
    # Fallback: one batch element, all heads. qkv_ref: (1, N, 3C); o_ref: (1, N, C).
    C = o_ref.shape[-1]
    qkv = qkv_ref[0]
    out = _attn_heads(qkv[:, :C], qkv[:, C:2 * C], qkv[:, 2 * C:3 * C],
                      head_dim=head_dim, coeffs=coeffs,
                      apply_relu=apply_relu, ew_dtype=ew_dtype)
    o_ref[0] = out.astype(o_ref.dtype)


def _heads_per_group(num_heads, head_dim):
    """Smallest head group whose column width is a 128-lane multiple."""
    for g in range(1, num_heads + 1):
        if num_heads % g == 0 and (g * head_dim) % 128 == 0:
            return g
    return None


def taylor_attention_core(qkv, *, num_heads, order, scale):
    """qkv: (B, N, 3*C) projection output -> attention output (B, N, C)."""
    assert order >= 1
    B, N, threeC = qkv.shape
    C = threeC // 3
    head_dim = C // num_heads

    # Taylor coefficients of exp with `scale` folded in: c_i = scale^i / i!.
    coeffs = tuple(float(scale ** i / math.factorial(i)) for i in range(order + 1))
    # Even-order truncated exp series is strictly positive -> ReLU is a no-op.
    apply_relu = (order % 2 == 1)
    # Horner chain dtype: packed bf16 on bf16 pipelines (v6e/v7x VPU), else f32.
    ew_dtype = jnp.bfloat16 if qkv.dtype == jnp.bfloat16 else jnp.float32

    g = _heads_per_group(num_heads, head_dim)
    if g is not None:
        G = num_heads // g          # number of head groups
        W = g * head_dim            # lane-aligned column width per group
        kernel = partial(_attn_kernel_grouped, head_dim=head_dim, coeffs=coeffs,
                         apply_relu=apply_relu, ew_dtype=ew_dtype)
        return pl.pallas_call(
            kernel,
            out_shape=jax.ShapeDtypeStruct((B, N, C), qkv.dtype),
            grid=(B, G),
            in_specs=[
                pl.BlockSpec((1, N, W), lambda b, j: (b, 0, j)),            # q group
                pl.BlockSpec((1, N, W), lambda b, j: (b, 0, G + j)),        # k group
                pl.BlockSpec((1, N, W), lambda b, j: (b, 0, 2 * G + j)),    # v group
            ],
            out_specs=pl.BlockSpec((1, N, W), lambda b, j: (b, 0, j)),
            compiler_params=pltpu.CompilerParams(
                dimension_semantics=("parallel", "parallel"),
                vmem_limit_bytes=_VMEM_LIMIT,
            ),
        )(qkv, qkv, qkv)

    # Fallback: full-extent blocks (always BlockSpec-legal) for unaligned widths.
    kernel = partial(_attn_kernel_fused, head_dim=head_dim, coeffs=coeffs,
                     apply_relu=apply_relu, ew_dtype=ew_dtype)
    return pl.pallas_call(
        kernel,
        out_shape=jax.ShapeDtypeStruct((B, N, C), qkv.dtype),
        grid=(B,),
        in_specs=[pl.BlockSpec((1, N, 3 * C), lambda b: (b, 0, 0))],
        out_specs=pl.BlockSpec((1, N, C), lambda b: (b, 0, 0)),
        compiler_params=pltpu.CompilerParams(
            dimension_semantics=("parallel",),
            vmem_limit_bytes=_VMEM_LIMIT,
        ),
    )(qkv)


# ----------------------------------------------------------------------------
# Full TaylorAttention forward (no XLA-side transposes anywhere)
# ----------------------------------------------------------------------------
def taylor_attention_forward(x, params, *, num_heads, order):
    """x: (B, N, C) -> (B, N, C). Matches PyTorch TaylorAttention.forward with
    qkv_bias=False, qk_norm=False, dropout=0 (inference)."""
    B, N, C = x.shape
    assert C % num_heads == 0
    head_dim = C // num_heads
    scale = head_dim ** (-0.5)

    qkv = linear_pallas(x.reshape(B * N, C), params["w_qkv"], params["b_qkv"])
    qkv = qkv.reshape(B, N, 3 * C)                       # contiguous reshape, no copy

    out = taylor_attention_core(qkv, num_heads=num_heads, order=order, scale=scale)

    out = linear_pallas(out.reshape(B * N, C), params["w_proj"], params["b_proj"])
    return out.reshape(B, N, C)


# ----------------------------------------------------------------------------
# Pure-JAX reference (faithful mirror of the PyTorch code) for correctness.
# ----------------------------------------------------------------------------
def taylor_attention_reference(x, params, *, num_heads, order):
    B, N, C = x.shape
    head_dim = C // num_heads
    scale = head_dim ** (-0.5)
    qkv = x.reshape(B * N, C) @ params["w_qkv"] + params["b_qkv"]
    qkv = qkv.reshape(B, N, 3, num_heads, head_dim)
    qkv = jnp.transpose(qkv, (2, 0, 3, 1, 4))
    q, k, v = qkv[0], qkv[1], qkv[2]
    q = q * scale
    s = jnp.einsum("bhnd,bhmd->bhnm", q, k)
    attn = jnp.ones_like(s)
    x_power = s
    for i in range(1, order + 1):
        attn = attn + x_power / float(math.factorial(i))
        if i < order:
            x_power = x_power * s
    attn = jnp.maximum(attn, 0.0)
    attn = attn / jnp.sum(attn, axis=-1, keepdims=True)
    out = jnp.einsum("bhnm,bhmd->bhnd", attn, v)
    out = jnp.transpose(out, (0, 2, 1, 3)).reshape(B, N, C)
    out = out.reshape(B * N, C) @ params["w_proj"] + params["b_proj"]
    return out.reshape(B, N, C)


# ----------------------------------------------------------------------------
# Main
# ----------------------------------------------------------------------------
if __name__ == "__main__":
    def make_case(key, B, N, C):
        k_x, k_wqkv, k_wproj, k_bproj = jax.random.split(key, 4)
        x = jax.random.normal(k_x, (B, N, C), dtype=jnp.float32)
        params = {
            "w_qkv": 0.02 * jax.random.normal(k_wqkv, (C, 3 * C), dtype=jnp.float32),
            "b_qkv": jnp.zeros((3 * C,), dtype=jnp.float32),   # qkv_bias=False
            "w_proj": 0.02 * jax.random.normal(k_wproj, (C, C), dtype=jnp.float32),
            "b_proj": 0.01 * jax.random.normal(k_bproj, (C,), dtype=jnp.float32),
        }
        return x, params

    key = jax.random.PRNGKey(0)
    k1, k2 = jax.random.split(key)

    # Case 1: lane-aligned ViT-ish shapes -> head-pair grid kernel, order=2 (ReLU elided).
    x1, p1 = make_case(k1, B=2, N=128, C=256)
    out1 = jax.block_until_ready(taylor_attention_forward(x1, p1, num_heads=4, order=2))
    ref1 = taylor_attention_reference(x1, p1, num_heads=4, order=2)
    assert out1.shape == (2, 128, 256)
    assert jnp.allclose(out1, ref1, atol=2e-3, rtol=2e-3), "case1 mismatch vs reference"

    # Case 2: tiny unaligned shapes -> fused fallback kernel, order=1 (ReLU kept).
    x2, p2 = make_case(k2, B=2, N=8, C=32)
    out2 = jax.block_until_ready(taylor_attention_forward(x2, p2, num_heads=4, order=1))
    ref2 = taylor_attention_reference(x2, p2, num_heads=4, order=1)
    assert out2.shape == (2, 8, 32)
    assert jnp.allclose(out2, ref2, atol=2e-3, rtol=2e-3), "case2 mismatch vs reference"

    # Case 3: bf16 pipeline smoke test (bf16 MXU operands, bf16 Horner chain).
    xb = x1.astype(jnp.bfloat16)
    pb = {k: v.astype(jnp.bfloat16) for k, v in p1.items()}
    out3 = jax.block_until_ready(taylor_attention_forward(xb, pb, num_heads=4, order=2))
    assert out3.shape == (2, 128, 256)
    assert bool(jnp.all(jnp.isfinite(out3.astype(jnp.float32)))), "bf16 path produced non-finite values"

    print("KERNEL_OK")
</pallas_src>

<mosaic_0001>
module attributes {stable_mosaic.version = 11 : i64} {
  func.func @_linear_kernel(%arg0: i32, %arg1: i32, %arg2: memref<256x256xf32, #tpu.memory_space<vmem>>, %arg3: memref<256x256xf32, #tpu.memory_space<vmem>>, %arg4: memref<1x256xf32, #tpu.memory_space<vmem>>, %arg5: memref<256x256xf32, #tpu.memory_space<vmem>>) attributes {dimension_semantics = [#tpu.dimension_semantics<parallel>, #tpu.dimension_semantics<parallel>], iteration_bounds = array<i64: 1, 3>, scalar_prefetch = 0 : i64, scratch_operands = 0 : i64, tpu.core_type = #tpu.core_type<tc>, window_params = [{transform_indices = @transform_0, window_bounds = array<i64: 256, 256>}, {transform_indices = @transform_1, window_bounds = array<i64: 256, 256>}, {transform_indices = @transform_2, window_bounds = array<i64: 1, 256>}, {transform_indices = @transform_3, window_bounds = array<i64: 256, 256>}]} {
    %c0 = arith.constant 0 : index
    %c0_0 = arith.constant 0 : index
    %0 = vector.load %arg2[%c0, %c0_0] : memref<256x256xf32, #tpu.memory_space<vmem>>, vector<256x256xf32>
    %c0_1 = arith.constant 0 : index
    %c0_2 = arith.constant 0 : index
    %1 = vector.load %arg3[%c0_1, %c0_2] : memref<256x256xf32, #tpu.memory_space<vmem>>, vector<256x256xf32>
    %cst = arith.constant dense<0.000000e+00> : vector<256x256xf32>
    %2 = tpu.matmul %0, %1, %cst {dimension_numbers = #tpu.dot_dimension_numbers<[1], [0], [0], [1], [0, 0, 1, 1], [], []>} : vector<256x256xf32>, vector<256x256xf32>, vector<256x256xf32> -> vector<256x256xf32>
    %c0_3 = arith.constant 0 : index
    %c0_4 = arith.constant 0 : index
    %3 = vector.load %arg4[%c0_3, %c0_4] : memref<1x256xf32, #tpu.memory_space<vmem>>, vector<1x256xf32>
    %4 = vector.broadcast %3 : vector<1x256xf32> to vector<256x256xf32>
    %5 = arith.addf %2, %4 : vector<256x256xf32>
    %c0_5 = arith.constant 0 : index
    %c0_6 = arith.constant 0 : index
    %6 = vector.load %arg5[%c0_5, %c0_6] : memref<256x256xf32, #tpu.memory_space<vmem>>, vector<256x256xf32>
    tpu.vector_store %arg5[%c0_5, %c0_6], %5 {strides = array<i32>} : memref<256x256xf32, #tpu.memory_space<vmem>>, vector<256x256xf32>,
    return
  }
  func.func @transform_0(%arg0: i32, %arg1: i32) -> (i32, i32) {
    %c0_i32 = arith.constant 0 : i32
    %c0_i32_0 = arith.constant 0 : i32
    return %arg0, %c0_i32 : i32, i32
  }
  func.func @transform_1(%arg0: i32, %arg1: i32) -> (i32, i32) {
    %c0_i32 = arith.constant 0 : i32
    %c0_i32_0 = arith.constant 0 : i32
    return %c0_i32, %arg1 : i32, i32
  }
  func.func @transform_2(%arg0: i32, %arg1: i32) -> (i32, i32) {
    %c0_i32 = arith.constant 0 : i32
    %c0_i32_0 = arith.constant 0 : i32
    return %c0_i32, %arg1 : i32, i32
  }
  func.func @transform_3(%arg0: i32, %arg1: i32) -> (i32, i32) {
    %c0_i32 = arith.constant 0 : i32
    return %arg0, %arg1 : i32, i32
  }
}

</mosaic_0001>

<llo_original>
// kernel: tpu_custom_call.1
$region0: #{tpu_custom_call.1}
  #allocation0 [shape = 'u32[]', space=smem, size = 0x4, offset = 0x4, fixed_abs, tag = 'smem constant byte address 0x4 - core index']
  #allocation1 [shape = 'u32[144,128]{1,0:T(1,128)}', space=vmem, size = 0x12000, scoped, tag = 'internal scratch']
  %s0 = inlined_call_operand.hbm [shape: f32[256,256], index: 0, kind: input, shape index: {}]
  %s1 = inlined_call_operand.hbm [shape: f32[256,768], index: 1, kind: input, shape index: {}]
  %s2 = inlined_call_operand.vmem [shape: f32[1,768], index: 2, kind: input, shape index: {}]
  %s3 = inlined_call_operand.hbm [shape: f32[256,768], index: 3, kind: output, shape index: {}]
  %s4 = sld [smem:[#allocation0]]
  $region53: #{tpu_custom_call.1} parent=0
    _
  %s6 = ssub.s32 1, %s4
  %s7 = scalar_select 0, %s6, %s4
  $region1: #{tpu_custom_call.1} parent=0
    #allocation2 [shape = 'u8[262144]{0}', space=vmem, size = 0x40000, scoped, tag = 'input window, operand 0, single buffered']
    #allocation3 [shape = 's32[2]{0}', space=sflag, size = 0x8, scoped, tag = 'scoped memory for tpu_custom_call.1']
    #allocation4 [shape = 's32[2]{0}', space=sflag, size = 0x8, scoped, tag = 'scoped memory for tpu_custom_call.1']
    #allocation5 [shape = 'u8[524288]{0}', space=vmem, size = 0x80000, scoped, tag = 'input window, operand 1']
    #allocation6 [shape = 's32[2]{0}', space=sflag, size = 0x8, scoped, tag = 'scoped memory for tpu_custom_call.1']
    #allocation7 [shape = 'u8[524288]{0}', space=vmem, size = 0x80000, scoped, tag = 'output window, operand 0']
    %8 = vsyncpa [#allocation3], 0
    %9 = vsyncpa [#allocation6], 0
    %s10 = scalar_lea.sflag [#allocation6], 1
    %11 = vsyncpa %s10, 0
    %12 = vsyncpa [#allocation4], 0
    %s13 = scalar_lea.sflag [#allocation4], 1
    %14 = vsyncpa %s13, 0
    loop: start=0, step=1, limit=5
    $region2: #{tpu_custom_call.1} parent=1 // loop_pre_header
      _
    $region3: #{tpu_custom_call.1} parent=1 // loop_header
      %s16 = sphi 0, %s20
      %p17 = scmp.ge.s32.totalorder %s16, 5
      %s23 = sphi 0, %s35
      %s24 = sphi 0, %s31
      %s25 = sphi 0, %s23
      %s26 = sphi 0, %s24
      %s27 = sphi 0, %s25
      %s28 = sphi 0, %s26
      %s38 = sphi 0, %s40
      %s41 = sphi 0, %s38
      %s42 = sphi 0, %s41
      %s58 = sphi 0, %s42
      %s64 = sphi 0, %s66
      %s67 = sphi 0, %s64
      %s68 = sphi 0, %s67
      %s84 = sphi 0, %s68
      %s90 = sphi 0, %s92
      %s93 = sphi 0, %s90
      %s94 = sphi 0, %s93
      %s110 = sphi 0, %s94
      %s118 = sphi 0, %s120
      %s121 = sphi 0, %s118
      %s122 = sphi 0, %s121
      %s138 = sphi 0, %s122
    $region4: #{tpu_custom_call.1} parent=1 // loop_header_branch
      %19 = sbr.rel (%p17) target = $region8
    $region5: #{tpu_custom_call.1} parent=1 // loop_body
      %s21 = ssub.s32 %s16, 1
      %s22 = ssub.s32 %s16, 2
      %s29 = sadd.s32 1, %s24
      %p30 = scmp.ge.s32.totalorder %s29, 3
      %s31 = scalar_select %p30, 0, %s29
      %s32 = sadd.s32 1, %s23
      %s33 = scalar_select %p30, %s32, %s23
      %p34 = scmp.ge.s32.totalorder %s33, 1
      %s35 = scalar_select %p34, 0, %s33
      %s36 = ssub.s32 %s23, %s35
      %p37 = scmp.eq.s32.totalorder %s36, 0
      %s39 = sadd.s32 %s38, 1
      %s40 = scalar_select %p37, %s38, %s39
      %p43 = pneg %p37
      %p44 = scmp.eq.s32.totalorder %s16, 2
      %p45 = por %p43, %p44
      %p46 = scmp.ne.s32.totalorder %s38, %s41
      %p47 = scmp.eq.s32.totalorder %s16, 0
      %p48 = por %p46, %p47
      %p49 = scmp.ne.s32.totalorder %s38, %s41
      %p50 = scmp.eq.s32.totalorder %s21, 2
      %p51 = por %p49, %p50
      %p52 = scmp.ne.s32.totalorder %s41, %s42
      %p53 = scmp.eq.s32.totalorder %s21, 0
      %p54 = por %p52, %p53
      %p55 = scmp.ne.s32.totalorder %s41, %s42
      %p56 = scmp.eq.s32.totalorder %s22, 2
      %p57 = por %p55, %p56
      %p59 = scmp.ne.s32.totalorder %s42, %s58
      %p60 = scmp.eq.s32.totalorder %s22, 0
      %p61 = por %p59, %p60
      %s62 = ssub.s32 %s24, %s31
      %p63 = scmp.eq.s32.totalorder %s62, 0
      %s65 = sadd.s32 %s64, 1
      %s66 = scalar_select %p63, %s64, %s65
      %p69 = pneg %p63
      %p70 = scmp.eq.s32.totalorder %s16, 2
      %p71 = por %p69, %p70
      %p72 = scmp.ne.s32.totalorder %s64, %s67
      %p73 = scmp.eq.s32.totalorder %s16, 0
      %p74 = por %p72, %p73
      %p75 = scmp.ne.s32.totalorder %s64, %s67
      %p76 = scmp.eq.s32.totalorder %s21, 2
      %p77 = por %p75, %p76
      %p78 = scmp.ne.s32.totalorder %s67, %s68
      %p79 = scmp.eq.s32.totalorder %s21, 0
      %p80 = por %p78, %p79
      %p81 = scmp.ne.s32.totalorder %s67, %s68
      %p82 = scmp.eq.s32.totalorder %s22, 2
      %p83 = por %p81, %p82
      %p85 = scmp.ne.s32.totalorder %s68, %s84
      %p86 = scmp.eq.s32.totalorder %s22, 0
      %p87 = por %p85, %p86
      %s88 = ssub.s32 %s24, %s31
      %p89 = scmp.eq.s32.totalorder %s88, 0
      %s91 = sadd.s32 %s90, 1
      %s92 = scalar_select %p89, %s90, %s91
      %p95 = pneg %p89
      %p96 = scmp.eq.s32.totalorder %s16, 2
      %p97 = por %p95, %p96
      %p98 = scmp.ne.s32.totalorder %s90, %s93
      %p99 = scmp.eq.s32.totalorder %s16, 0
      %p100 = por %p98, %p99
      %p101 = scmp.ne.s32.totalorder %s90, %s93
      %p102 = scmp.eq.s32.totalorder %s21, 2
      %p103 = por %p101, %p102
      %p104 = scmp.ne.s32.totalorder %s93, %s94
      %p105 = scmp.eq.s32.totalorder %s21, 0
      %p106 = por %p104, %p105
      %p107 = scmp.ne.s32.totalorder %s93, %s94
      %p108 = scmp.eq.s32.totalorder %s22, 2
      %p109 = por %p107, %p108
      %p111 = scmp.ne.s32.totalorder %s94, %s110
      %p112 = scmp.eq.s32.totalorder %s22, 0
      %p113 = por %p111, %p112
      %s114 = ssub.s32 %s23, %s35
      %s115 = ssub.s32 %s24, %s31
      %s116 = sor.u32 %s114, %s115
      %p117 = scmp.eq.s32.totalorder %s116, 0
      %s119 = sadd.s32 %s118, 1
      %s120 = scalar_select %p117, %s118, %s119
      %p123 = pneg %p117
      %p124 = scmp.eq.s32.totalorder %s16, 2
      %p125 = por %p123, %p124
      %p126 = scmp.ne.s32.totalorder %s118, %s121
      %p127 = scmp.eq.s32.totalorder %s16, 0
      %p128 = por %p126, %p127
      %p129 = scmp.ne.s32.totalorder %s118, %s121
      %p130 = scmp.eq.s32.totalorder %s21, 2
      %p131 = por %p129, %p130
      %p132 = scmp.ne.s32.totalorder %s121, %s122
      %p133 = scmp.eq.s32.totalorder %s21, 0
      %p134 = por %p132, %p133
      %p135 = scmp.ne.s32.totalorder %s121, %s122
      %p136 = scmp.eq.s32.totalorder %s22, 2
      %p137 = por %p135, %p136
      %p139 = scmp.ne.s32.totalorder %s122, %s138
      %p140 = scmp.eq.s32.totalorder %s22, 0
      %p141 = por %p139, %p140
      %p142 = scmp.le.s32.totalorder 1, %s16
      %p143 = scmp.lt.s32.totalorder %s16, 4
      %p144 = pnand %p142, %p143
      %p145 = pneg %p144
      // Predicated region
      $region9: #{tpu_custom_call.1} parent=5 // pred_check
        _
      $region10: #{tpu_custom_call.1} parent=5 // pred_check_branch
        %147 = sbr.rel (%p144) target = $region12
      $region11: #{tpu_custom_call.1} parent=5 // pred_region
        %s148 = ssub.s32 %s16, 1
        // Predicated region
        $region13: #{tpu_custom_call.1} parent=11 // pred_check
          %p149 = pneg %p54
        $region14: #{tpu_custom_call.1} parent=11 // pred_check_branch
          %151 = sbr.rel (%p149) target = $region16
        $region15: #{tpu_custom_call.1} parent=11 // pred_region
          %s152 = smul.u32 32, %s25
          %s154 = ssub.s32 8192, 8192
          %155 = vsyncadd [#allocation3], %s154
          %s156 = smul.addr %s152, 2
          %s157 = smul.addr %s156, 128
          %s158 = scalar_lea.hbm %s0, %s157
          %s159 = sshll.u32 [#allocation2], 4
          %s160 = int_to_ptr.vmem [resolvable:$true] %s159
          %165 = dma.hbm_to_vmem [thread:$0]  %s158, 8192, %s160, [#allocation3], 256, 256, 16
        $region16: #{tpu_custom_call.1} parent=11 // pred_fallthru
          _
      $region12: #{tpu_custom_call.1} parent=5 // pred_fallthru
        _
      %p166 = scmp.lt.s32.totalorder %s16, 3
      // Predicated region
      $region17: #{tpu_custom_call.1} parent=5 // pred_check
        %p167 = pneg %p166
      $region18: #{tpu_custom_call.1} parent=5 // pred_check_branch
        %169 = sbr.rel (%p167) target = $region20
      $region19: #{tpu_custom_call.1} parent=5 // pred_region
        // Predicated region
        $region21: #{tpu_custom_call.1} parent=19 // pred_check
          %p170 = pneg %p74
        $region22: #{tpu_custom_call.1} parent=19 // pred_check_branch
          %172 = sbr.rel (%p170) target = $region24
        $region23: #{tpu_custom_call.1} parent=19 // pred_region
          %s173 = sand.u32 %s64, 1
          %s174 = scalar_lea.sflag [#allocation6], %s173
          %s175 = sand.u32 %s64, 1
          %s176 = smul.addr %s175, 512
          %s177 = scalar_lea.vmem [#allocation5], %s176
          %s178 = smul.u32 2, %s24
          %s180 = ssub.s32 8192, 8192
          %181 = vsyncadd %s174, %s180
          %s182 = smul.addr %s178, 128
          %s183 = scalar_lea.hbm %s1, %s182
          %s184 = sshll.u32 %s177, 4
          %s185 = int_to_ptr.vmem [resolvable:$true] %s184
          %190 = dma.hbm_to_vmem [thread:$0]  %s183, 8192, %s185, %s174, 768, 256, 16
        $region24: #{tpu_custom_call.1} parent=19 // pred_fallthru
          _
        // Predicated region
        $region25: #{tpu_custom_call.1} parent=19 // pred_check
          %p191 = pneg %p100
        $region26: #{tpu_custom_call.1} parent=19 // pred_check_branch
          %193 = sbr.rel (%p191) target = $region28
        $region27: #{tpu_custom_call.1} parent=19 // pred_region
          %s194 = smul.u32 2, %s24
          %p195 = scmp.lt.s32.totalorder %s194, 5
          %s196 = scalar_select %p195, %s194, 5
          %s197 = scalar_lea.vmem %s2, %s196
          %s198 = smul.u32 2, %s24
        $region28: #{tpu_custom_call.1} parent=19 // pred_fallthru
          _
      $region20: #{tpu_custom_call.1} parent=5 // pred_fallthru
        _
      %p199 = scmp.le.s32.totalorder 1, %s16
      %p200 = scmp.lt.s32.totalorder %s16, 4
      %p201 = pnand %p199, %p200
      %p202 = pneg %p201
      // Predicated region
      $region29: #{tpu_custom_call.1} parent=5 // pred_check
        _
      $region30: #{tpu_custom_call.1} parent=5 // pred_check_branch
        %204 = sbr.rel (%p201) target = $region32
      $region31: #{tpu_custom_call.1} parent=5 // pred_region
        %s205 = ssub.s32 %s16, 1
        // Predicated region
        $region33: #{tpu_custom_call.1} parent=31 // pred_check
          %p206 = pneg %p54
        $region34: #{tpu_custom_call.1} parent=31 // pred_check_branch
          %208 = sbr.rel (%p206) target = $region36
        $region35: #{tpu_custom_call.1} parent=31 // pred_region
          %209 = dma.done [#allocation3], 8192
        $region36: #{tpu_custom_call.1} parent=31 // pred_fallthru
          _
        %s210 = sand.u32 %s67, 1
        %s211 = scalar_lea.sflag [#allocation6], %s210
        %s212 = sand.u32 %s67, 1
        %s213 = smul.addr %s212, 512
        %s214 = scalar_lea.vmem [#allocation5], %s213
        // Predicated region
        $region37: #{tpu_custom_call.1} parent=31 // pred_check
          %p215 = pneg %p80
        $region38: #{tpu_custom_call.1} parent=31 // pred_check_branch
          %217 = sbr.rel (%p215) target = $region40
        $region39: #{tpu_custom_call.1} parent=31 // pred_region
          %218 = dma.done %s211, 8192
        $region40: #{tpu_custom_call.1} parent=31 // pred_fallthru
          _
        %p219 = pneg %p54
        %p220 = pneg %p51
        %s221 = sand.u32 %s67, 1
        %s222 = scalar_lea.sflag [#allocation6], %s221
        %s223 = sand.u32 %s67, 1
        %s224 = smul.addr %s223, 512
        %s225 = scalar_lea.vmem [#allocation5], %s224
        %p226 = pneg %p80
        %p227 = pneg %p77
        %s228 = smul.u32 2, %s26
        %p229 = scmp.lt.s32.totalorder %s228, 5
        %s230 = scalar_select %p229, %s228, 5
        %s231 = scalar_lea.vmem %s2, %s230
        %p232 = pneg %p106
        %p233 = pneg %p103
        %p234 = pneg %p134
        %p235 = pneg %p131
        %s236 = sand.u32 %s121, 1
        %s237 = scalar_lea.sflag [#allocation4], %s236
        %s238 = sand.u32 %s121, 1
        %s239 = smul.addr %s238, 512
        %s240 = scalar_lea.vmem [#allocation7], %s239
        %s241 = smul.u32 32, %s25
        %s242 = smul.u32 2, %s26
        %s243 = smul.u32 2, %s26
        %p244 = scmp.lt.s32.totalorder %s243, 5
        %s245 = scalar_select %p244, %s243, 5
        %s246 = scalar_lea.vmem %s2, %s245
        %s247 = smul.u32 2, %s26
        %s248 = smul.u32 32, %s25
        %s249 = smul.u32 2, %s26
        %v250 = vld [vmem:[#allocation2] sm:$0xff]
        %v251 = vld [vmem:[#allocation2 + $0x8] sm:$0xff]
        %v252 = vld [vmem:[#allocation2 + $0x10] sm:$0xff]
        %v253 = vld [vmem:[#allocation2 + $0x18] sm:$0xff]
        %v254 = vld [vmem:[#allocation2 + $0x20] sm:$0xff]
        %v255 = vld [vmem:[#allocation2 + $0x28] sm:$0xff]
        %v256 = vld [vmem:[#allocation2 + $0x30] sm:$0xff]
        %v257 = vld [vmem:[#allocation2 + $0x38] sm:$0xff]
        %v258 = vld [vmem:[#allocation2 + $0x40] sm:$0xff]
        %v259 = vld [vmem:[#allocation2 + $0x48] sm:$0xff]
        %v260 = vld [vmem:[#allocation2 + $0x50] sm:$0xff]
        %v261 = vld [vmem:[#allocation2 + $0x58] sm:$0xff]
        %v262 = vld [vmem:[#allocation2 + $0x60] sm:$0xff]
        %v263 = vld [vmem:[#allocation2 + $0x68] sm:$0xff]
        %v264 = vld [vmem:[#allocation2 + $0x70] sm:$0xff]
        %v265 = vld [vmem:[#allocation2 + $0x78] sm:$0xff]
        %v266 = vld [vmem:[#allocation2 + $0x80] sm:$0xff]
        %v267 = vld [vmem:[#allocation2 + $0x88] sm:$0xff]
        %v268 = vld [vmem:[#allocation2 + $0x90] sm:$0xff]
        %v269 = vld [vmem:[#allocation2 + $0x98] sm:$0xff]
        %v270 = vld [vmem:[#allocation2 + $0xa0] sm:$0xff]
        %v271 = vld [vmem:[#allocation2 + $0xa8] sm:$0xff]
        %v272 = vld [vmem:[#allocation2 + $0xb0] sm:$0xff]
        %v273 = vld [vmem:[#allocation2 + $0xb8] sm:$0xff]
        %v274 = vld [vmem:[#allocation2 + $0xc0] sm:$0xff]
        %v275 = vld [vmem:[#allocation2 + $0xc8] sm:$0xff]
        %v276 = vld [vmem:[#allocation2 + $0xd0] sm:$0xff]
        %v277 = vld [vmem:[#allocation2 + $0xd8] sm:$0xff]
        %v278 = vld [vmem:[#allocation2 + $0xe0] sm:$0xff]
        %v279 = vld [vmem:[#allocation2 + $0xe8] sm:$0xff]
        %v280 = vld [vmem:[#allocation2 + $0xf0] sm:$0xff]
        %v281 = vld [vmem:[#allocation2 + $0xf8] sm:$0xff]
        %v282 = vld [vmem:[#allocation2 + $0x100] sm:$0xff]
        %v283 = vld [vmem:[#allocation2 + $0x108] sm:$0xff]
        %v284 = vld [vmem:[#allocation2 + $0x110] sm:$0xff]
        %v285 = vld [vmem:[#allocation2 + $0x118] sm:$0xff]
        %v286 = vld [vmem:[#allocation2 + $0x120] sm:$0xff]
        %v287 = vld [vmem:[#allocation2 + $0x128] sm:$0xff]
        %v288 = vld [vmem:[#allocation2 + $0x130] sm:$0xff]
        %v289 = vld [vmem:[#allocation2 + $0x138] sm:$0xff]
        %v290 = vld [vmem:[#allocation2 + $0x140] sm:$0xff]
        %v291 = vld [vmem:[#allocation2 + $0x148] sm:$0xff]
        %v292 = vld [vmem:[#allocation2 + $0x150] sm:$0xff]
        %v293 = vld [vmem:[#allocation2 + $0x158] sm:$0xff]
        %v294 = vld [vmem:[#allocation2 + $0x160] sm:$0xff]
        %v295 = vld [vmem:[#allocation2 + $0x168] sm:$0xff]
        %v296 = vld [vmem:[#allocation2 + $0x170] sm:$0xff]
        %v297 = vld [vmem:[#allocation2 + $0x178] sm:$0xff]
        %v298 = vld [vmem:[#allocation2 + $0x180] sm:$0xff]
        %v299 = vld [vmem:[#allocation2 + $0x188] sm:$0xff]
        %v300 = vld [vmem:[#allocation2 + $0x190] sm:$0xff]
        %v301 = vld [vmem:[#allocation2 + $0x198] sm:$0xff]
        %v302 = vld [vmem:[#allocation2 + $0x1a0] sm:$0xff]
        %v303 = vld [vmem:[#allocation2 + $0x1a8] sm:$0xff]
        %v304 = vld [vmem:[#allocation2 + $0x1b0] sm:$0xff]
        %v305 = vld [vmem:[#allocation2 + $0x1b8] sm:$0xff]
        %v306 = vld [vmem:[#allocation2 + $0x1c0] sm:$0xff]
        %v307 = vld [vmem:[#allocation2 + $0x1c8] sm:$0xff]
        %v308 = vld [vmem:[#allocation2 + $0x1d0] sm:$0xff]
        %v309 = vld [vmem:[#allocation2 + $0x1d8] sm:$0xff]
        %v310 = vld [vmem:[#allocation2 + $0x1e0] sm:$0xff]
        %v311 = vld [vmem:[#allocation2 + $0x1e8] sm:$0xff]
        %v312 = vld [vmem:[#allocation2 + $0x1f0] sm:$0xff]
        %v313 = vld [vmem:[#allocation2 + $0x1f8] sm:$0xff]
        %v314 = vld [vmem:[%s214] sm:$0xff]
        %v315 = vld [vmem:[%s214 + $0x8] sm:$0xff]
        %v316 = vld [vmem:[%s214 + $0x10] sm:$0xff]
        %v317 = vld [vmem:[%s214 + $0x18] sm:$0xff]
        %v318 = vld [vmem:[%s214 + $0x20] sm:$0xff]
        %v319 = vld [vmem:[%s214 + $0x28] sm:$0xff]
        %v320 = vld [vmem:[%s214 + $0x30] sm:$0xff]
        %v321 = vld [vmem:[%s214 + $0x38] sm:$0xff]
        %v322 = vld [vmem:[%s214 + $0x40] sm:$0xff]
        %v323 = vld [vmem:[%s214 + $0x48] sm:$0xff]
        %v324 = vld [vmem:[%s214 + $0x50] sm:$0xff]
        %v325 = vld [vmem:[%s214 + $0x58] sm:$0xff]
        %v326 = vld [vmem:[%s214 + $0x60] sm:$0xff]
        %v327 = vld [vmem:[%s214 + $0x68] sm:$0xff]
        %v328 = vld [vmem:[%s214 + $0x70] sm:$0xff]
        %v329 = vld [vmem:[%s214 + $0x78] sm:$0xff]
        %v330 = vld [vmem:[%s214 + $0x80] sm:$0xff]
        %v331 = vld [vmem:[%s214 + $0x88] sm:$0xff]
        %v332 = vld [vmem:[%s214 + $0x90] sm:$0xff]
        %v333 = vld [vmem:[%s214 + $0x98] sm:$0xff]
        %v334 = vld [vmem:[%s214 + $0xa0] sm:$0xff]
        %v335 = vld [vmem:[%s214 + $0xa8] sm:$0xff]
        %v336 = vld [vmem:[%s214 + $0xb0] sm:$0xff]
        %v337 = vld [vmem:[%s214 + $0xb8] sm:$0xff]
        %v338 = vld [vmem:[%s214 + $0xc0] sm:$0xff]
        %v339 = vld [vmem:[%s214 + $0xc8] sm:$0xff]
        %v340 = vld [vmem:[%s214 + $0xd0] sm:$0xff]
        %v341 = vld [vmem:[%s214 + $0xd8] sm:$0xff]
        %v342 = vld [vmem:[%s214 + $0xe0] sm:$0xff]
        %v343 = vld [vmem:[%s214 + $0xe8] sm:$0xff]
        %v344 = vld [vmem:[%s214 + $0xf0] sm:$0xff]
        %v345 = vld [vmem:[%s214 + $0xf8] sm:$0xff]
        %v346 = vld [vmem:[%s214 + $0x100] sm:$0xff]
        %v347 = vld [vmem:[%s214 + $0x108] sm:$0xff]
        %v348 = vld [vmem:[%s214 + $0x110] sm:$0xff]
        %v349 = vld [vmem:[%s214 + $0x118] sm:$0xff]
        %v350 = vld [vmem:[%s214 + $0x120] sm:$0xff]
        %v351 = vld [vmem:[%s214 + $0x128] sm:$0xff]
        %v352 = vld [vmem:[%s214 + $0x130] sm:$0xff]
        %v353 = vld [vmem:[%s214 + $0x138] sm:$0xff]
        %v354 = vld [vmem:[%s214 + $0x140] sm:$0xff]
        %v355 = vld [vmem:[%s214 + $0x148] sm:$0xff]
        %v356 = vld [vmem:[%s214 + $0x150] sm:$0xff]
        %v357 = vld [vmem:[%s214 + $0x158] sm:$0xff]
        %v358 = vld [vmem:[%s214 + $0x160] sm:$0xff]
        %v359 = vld [vmem:[%s214 + $0x168] sm:$0xff]
        %v360 = vld [vmem:[%s214 + $0x170] sm:$0xff]
        %v361 = vld [vmem:[%s214 + $0x178] sm:$0xff]
        %v362 = vld [vmem:[%s214 + $0x180] sm:$0xff]
        %v363 = vld [vmem:[%s214 + $0x188] sm:$0xff]
        %v364 = vld [vmem:[%s214 + $0x190] sm:$0xff]
        %v365 = vld [vmem:[%s214 + $0x198] sm:$0xff]
        %v366 = vld [vmem:[%s214 + $0x1a0] sm:$0xff]
        %v367 = vld [vmem:[%s214 + $0x1a8] sm:$0xff]
        %v368 = vld [vmem:[%s214 + $0x1b0] sm:$0xff]
        %v369 = vld [vmem:[%s214 + $0x1b8] sm:$0xff]
        %v370 = vld [vmem:[%s214 + $0x1c0] sm:$0xff]
        %v371 = vld [vmem:[%s214 + $0x1c8] sm:$0xff]
        %v372 = vld [vmem:[%s214 + $0x1d0] sm:$0xff]
        %v373 = vld [vmem:[%s214 + $0x1d8] sm:$0xff]
        %v374 = vld [vmem:[%s214 + $0x1e0] sm:$0xff]
        %v375 = vld [vmem:[%s214 + $0x1e8] sm:$0xff]
        %v376 = vld [vmem:[%s214 + $0x1f0] sm:$0xff]
        %v377 = vld [vmem:[%s214 + $0x1f8] sm:$0xff]
        %v378 = vld [vmem:[%s246] sm:$0x3]
        %v380 = vlaneseq
        %v381 = vshrl.u32 %v380, 7
        %v382 = vsub.s32 0, %v381
        %v383 = vrot.slane %v378, %v382
        %v384 = vlaneseq
        %v385 = vshrl.u32 %v384, 7
        %v386 = vsub.s32 1, %v385
        %v387 = vrot.slane %v378, %v386
        %390 = vmatprep.subr.mxu0 %v315
        %391 = vmatpush1.msra.mxu0 %v314
        %392 = vmatprep.subr.mxu0 %v317
        %393 = vmatpush1.msra.mxu0 %v316
        %394 = vmatprep.subr.mxu0 %v319
        %395 = vmatpush1.msra.mxu0 %v318
        %396 = vmatprep.subr.mxu0 %v321
        %397 = vmatpush1.msra.mxu0 %v320
        %398 = vmatprep.subr.mxu0 %v323
        %399 = vmatpush1.msra.mxu0 %v322
        %400 = vmatprep.subr.mxu0 %v325
        %401 = vmatpush1.msra.mxu0 %v324
        %402 = vmatprep.subr.mxu0 %v327
        %403 = vmatpush1.msra.mxu0 %v326
        %404 = vmatprep.subr.mxu0 %v329
        %405 = vmatpush1.msra.mxu0 %v328
        %406 = vmatprep.subr.mxu0 %v331
        %407 = vmatpush1.msra.mxu0 %v330
        %408 = vmatprep.subr.mxu0 %v333
        %409 = vmatpush1.msra.mxu0 %v332
        %410 = vmatprep.subr.mxu0 %v335
        %411 = vmatpush1.msra.mxu0 %v334
        %412 = vmatprep.subr.mxu0 %v337
        %413 = vmatpush1.msra.mxu0 %v336
        %414 = vmatprep.subr.mxu0 %v339
        %415 = vmatpush1.msra.mxu0 %v338
        %416 = vmatprep.subr.mxu0 %v341
        %417 = vmatpush1.msra.mxu0 %v340
        %418 = vmatprep.subr.mxu0 %v343
        %419 = vmatpush1.msra.mxu0 %v342
        %420 = vmatprep.subr.mxu0 %v345
        %421 = vmatpush1.msra.mxu0 %v344
        %422 = vmatprep.subr.mxu0 %v347
        %423 = vmatpush1.msra.mxu0 %v346
        %424 = vmatprep.subr.mxu0 %v349
        %425 = vmatpush1.msra.mxu0 %v348
        %426 = vmatprep.subr.mxu0 %v351
        %427 = vmatpush1.msra.mxu0 %v350
        %428 = vmatprep.subr.mxu0 %v353
        %429 = vmatpush1.msra.mxu0 %v352
        %430 = vmatprep.subr.mxu0 %v355
        %431 = vmatpush1.msra.mxu0 %v354
        %432 = vmatprep.subr.mxu0 %v357
        %433 = vmatpush1.msra.mxu0 %v356
        %434 = vmatprep.subr.mxu0 %v359
        %435 = vmatpush1.msra.mxu0 %v358
        %436 = vmatprep.subr.mxu0 %v361
        %437 = vmatpush1.msra.mxu0 %v360
        %438 = vmatprep.subr.mxu0 %v363
        %439 = vmatpush1.msra.mxu0 %v362
        %440 = vmatprep.subr.mxu0 %v365
        %441 = vmatpush1.msra.mxu0 %v364
        %442 = vmatprep.subr.mxu0 %v367
        %443 = vmatpush1.msra.mxu0 %v366
        %444 = vmatprep.subr.mxu0 %v369
        %445 = vmatpush1.msra.mxu0 %v368
        %446 = vmatprep.subr.mxu0 %v371
        %447 = vmatpush1.msra.mxu0 %v370
        %448 = vmatprep.subr.mxu0 %v373
        %449 = vmatpush1.msra.mxu0 %v372
        %450 = vmatprep.subr.mxu0 %v375
        %451 = vmatpush1.msra.mxu0 %v374
        %452 = vmatprep.subr.mxu0 %v377
        %453 = vmatpush1.msra.mxu0 %v376
        %454 = vmatprep.mubr.f32.mxu0 %v251
        %455 = vmatmul.mubr.f32.gmra.mrb[0].mxu0 %v250
        %v456 = vpop.f32.mrb[0].mxu0
        %v457 = vadd.f32 %v383, %v456
        %v458 = vpop.f32.mrb[0].mxu0
        %v459 = vadd.f32 %v387, %v458
        %460 = vmatprep.mubr.f32.mxu0 %v253
        %461 = vmatmul.mubr.f32.gmra.mrb[0].mxu0 %v252
        %v462 = vpop.f32.mrb[0].mxu0
        %v463 = vadd.f32 %v383, %v462
        %v464 = vpop.f32.mrb[0].mxu0
        %v465 = vadd.f32 %v387, %v464
        %466 = vmatprep.mubr.f32.mxu0 %v255
        %467 = vmatmul.mubr.f32.gmra.mrb[0].mxu0 %v254
        %v468 = vpop.f32.mrb[0].mxu0
        %v469 = vadd.f32 %v383, %v468
        %v470 = vpop.f32.mrb[0].mxu0
        %v471 = vadd.f32 %v387, %v470
        %472 = vmatprep.mubr.f32.mxu0 %v257
        %473 = vmatmul.mubr.f32.gmra.mrb[0].mxu0 %v256
        %v474 = vpop.f32.mrb[0].mxu0
        %v475 = vadd.f32 %v383, %v474
        %v476 = vpop.f32.mrb[0].mxu0
        %v477 = vadd.f32 %v387, %v476
        %478 = vmatprep.mubr.f32.mxu0 %v259
        %479 = vmatmul.mubr.f32.gmra.mrb[0].mxu0 %v258
        %v480 = vpop.f32.mrb[0].mxu0
        %v481 = vadd.f32 %v383, %v480
        %v482 = vpop.f32.mrb[0].mxu0
        %v483 = vadd.f32 %v387, %v482
        %484 = vmatprep.mubr.f32.mxu0 %v261
        %485 = vmatmul.mubr.f32.gmra.mrb[0].mxu0 %v260
        %v486 = vpop.f32.mrb[0].mxu0
        %v487 = vadd.f32 %v383, %v486
        %v488 = vpop.f32.mrb[0].mxu0
        %v489 = vadd.f32 %v387, %v488
        %490 = vmatprep.mubr.f32.mxu0 %v263
        %491 = vmatmul.mubr.f32.gmra.mrb[0].mxu0 %v262
        %v492 = vpop.f32.mrb[0].mxu0
        %v493 = vadd.f32 %v383, %v492
        %v494 = vpop.f32.mrb[0].mxu0
        %v495 = vadd.f32 %v387, %v494
        %496 = vmatprep.mubr.f32.mxu0 %v265
        %497 = vmatmul.mubr.f32.gmra.mrb[0].mxu0 %v264
        %v498 = vpop.f32.mrb[0].mxu0
        %v499 = vadd.f32 %v383, %v498
        %v500 = vpop.f32.mrb[0].mxu0
        %v501 = vadd.f32 %v387, %v500
        %502 = vmatprep.mubr.f32.mxu0 %v267
        %503 = vmatmul.mubr.f32.gmra.mrb[0].mxu0 %v266
        %v504 = vpop.f32.mrb[0].mxu0
        %v505 = vadd.f32 %v383, %v504
        %v506 = vpop.f32.mrb[0].mxu0
        %v507 = vadd.f32 %v387, %v506
        %508 = vmatprep.mubr.f32.mxu0 %v269
        %509 = vmatmul.mubr.f32.gmra.mrb[0].mxu0 %v268
        %v510 = vpop.f32.mrb[0].mxu0
        %v511 = vadd.f32 %v383, %v510
        %v512 = vpop.f32.mrb[0].mxu0
        %v513 = vadd.f32 %v387, %v512
        %514 = vmatprep.mubr.f32.mxu0 %v271
        %515 = vmatmul.mubr.f32.gmra.mrb[0].mxu0 %v270
        %v516 = vpop.f32.mrb[0].mxu0
        %v517 = vadd.f32 %v383, %v516
        %v518 = vpop.f32.mrb[0].mxu0
        %v519 = vadd.f32 %v387, %v518
        %520 = vmatprep.mubr.f32.mxu0 %v273
        %521 = vmatmul.mubr.f32.gmra.mrb[0].mxu0 %v272
        %v522 = vpop.f32.mrb[0].mxu0
        %v523 = vadd.f32 %v383, %v522
        %v524 = vpop.f32.mrb[0].mxu0
        %v525 = vadd.f32 %v387, %v524
        %526 = vmatprep.mubr.f32.mxu0 %v275
        %527 = vmatmul.mubr.f32.gmra.mrb[0].mxu0 %v274
        %v528 = vpop.f32.mrb[0].mxu0
        %v529 = vadd.f32 %v383, %v528
        %v530 = vpop.f32.mrb[0].mxu0
        %v531 = vadd.f32 %v387, %v530
        %532 = vmatprep.mubr.f32.mxu0 %v277
        %533 = vmatmul.mubr.f32.gmra.mrb[0].mxu0 %v276
        %v534 = vpop.f32.mrb[0].mxu0
        %v535 = vadd.f32 %v383, %v534
        %v536 = vpop.f32.mrb[0].mxu0
        %v537 = vadd.f32 %v387, %v536
        %538 = vmatprep.mubr.f32.mxu0 %v279
        %539 = vmatmul.mubr.f32.gmra.mrb[0].mxu0 %v278
        %v540 = vpop.f32.mrb[0].mxu0
        %v541 = vadd.f32 %v383, %v540
        %v542 = vpop.f32.mrb[0].mxu0
        %v543 = vadd.f32 %v387, %v542
        %544 = vmatprep.mubr.f32.mxu0 %v281
        %545 = vmatmul.mubr.f32.gmra.mrb[0].mxu0 %v280
        %v546 = vpop.f32.mrb[0].mxu0
        %v547 = vadd.f32 %v383, %v546
        %v548 = vpop.f32.mrb[0].mxu0
        %v549 = vadd.f32 %v387, %v548
        %550 = vmatprep.mubr.f32.mxu0 %v283
        %551 = vmatmul.mubr.f32.gmra.mrb[0].mxu0 %v282
        %v552 = vpop.f32.mrb[0].mxu0
        %v553 = vadd.f32 %v383, %v552
        %v554 = vpop.f32.mrb[0].mxu0
        %v555 = vadd.f32 %v387, %v554
        %556 = vmatprep.mubr.f32.mxu0 %v285
        %557 = vmatmul.mubr.f32.gmra.mrb[0].mxu0 %v284
        %v558 = vpop.f32.mrb[0].mxu0
        %v559 = vadd.f32 %v383, %v558
        %v560 = vpop.f32.mrb[0].mxu0
        %v561 = vadd.f32 %v387, %v560
        %562 = vmatprep.mubr.f32.mxu0 %v287
        %563 = vmatmul.mubr.f32.gmra.mrb[0].mxu0 %v286
        %v564 = vpop.f32.mrb[0].mxu0
        %v565 = vadd.f32 %v383, %v564
        %v566 = vpop.f32.mrb[0].mxu0
        %v567 = vadd.f32 %v387, %v566
        %568 = vmatprep.mubr.f32.mxu0 %v289
        %569 = vmatmul.mubr.f32.gmra.mrb[0].mxu0 %v288
        %v570 = vpop.f32.mrb[0].mxu0
        %v571 = vadd.f32 %v383, %v570
        %v572 = vpop.f32.mrb[0].mxu0
        %v573 = vadd.f32 %v387, %v572
        %574 = vmatprep.mubr.f32.mxu0 %v291
        %575 = vmatmul.mubr.f32.gmra.mrb[0].mxu0 %v290
        %v576 = vpop.f32.mrb[0].mxu0
        %v577 = vadd.f32 %v383, %v576
        %v578 = vpop.f32.mrb[0].mxu0
        %v579 = vadd.f32 %v387, %v578
        %580 = vmatprep.mubr.f32.mxu0 %v293
        %581 = vmatmul.mubr.f32.gmra.mrb[0].mxu0 %v292
        %v582 = vpop.f32.mrb[0].mxu0
        %v583 = vadd.f32 %v383, %v582
        %v584 = vpop.f32.mrb[0].mxu0
        %v585 = vadd.f32 %v387, %v584
        %586 = vmatprep.mubr.f32.mxu0 %v295
        %587 = vmatmul.mubr.f32.gmra.mrb[0].mxu0 %v294
        %v588 = vpop.f32.mrb[0].mxu0
        %v589 = vadd.f32 %v383, %v588
        %v590 = vpop.f32.mrb[0].mxu0
        %v591 = vadd.f32 %v387, %v590
        %592 = vmatprep.mubr.f32.mxu0 %v297
        %593 = vmatmul.mubr.f32.gmra.mrb[0].mxu0 %v296
        %v594 = vpop.f32.mrb[0].mxu0
        %v595 = vadd.f32 %v383, %v594
        %v596 = vpop.f32.mrb[0].mxu0
        %v597 = vadd.f32 %v387, %v596
        %598 = vmatprep.mubr.f32.mxu0 %v299
        %599 = vmatmul.mubr.f32.gmra.mrb[0].mxu0 %v298
        %v600 = vpop.f32.mrb[0].mxu0
        %v601 = vadd.f32 %v383, %v600
        %v602 = vpop.f32.mrb[0].mxu0
        %v603 = vadd.f32 %v387, %v602
        %604 = vmatprep.mubr.f32.mxu0 %v301
        %605 = vmatmul.mubr.f32.gmra.mrb[0].mxu0 %v300
        %v606 = vpop.f32.mrb[0].mxu0
        %v607 = vadd.f32 %v383, %v606
        %v608 = vpop.f32.mrb[0].mxu0
        %v609 = vadd.f32 %v387, %v608
        %610 = vmatprep.mubr.f32.mxu0 %v303
        %611 = vmatmul.mubr.f32.gmra.mrb[0].mxu0 %v302
        %v612 = vpop.f32.mrb[0].mxu0
        %v613 = vadd.f32 %v383, %v612
        %v614 = vpop.f32.mrb[0].mxu0
        %v615 = vadd.f32 %v387, %v614
        %616 = vmatprep.mubr.f32.mxu0 %v305
        %617 = vmatmul.mubr.f32.gmra.mrb[0].mxu0 %v304
        %v618 = vpop.f32.mrb[0].mxu0
        %v619 = vadd.f32 %v383, %v618
        %v620 = vpop.f32.mrb[0].mxu0
        %v621 = vadd.f32 %v387, %v620
        %622 = vmatprep.mubr.f32.mxu0 %v307
        %623 = vmatmul.mubr.f32.gmra.mrb[0].mxu0 %v306
        %v624 = vpop.f32.mrb[0].mxu0
        %v625 = vadd.f32 %v383, %v624
        %v626 = vpop.f32.mrb[0].mxu0
        %v627 = vadd.f32 %v387, %v626
        %628 = vmatprep.mubr.f32.mxu0 %v309
        %629 = vmatmul.mubr.f32.gmra.mrb[0].mxu0 %v308
        %v630 = vpop.f32.mrb[0].mxu0
        %v631 = vadd.f32 %v383, %v630
        %v632 = vpop.f32.mrb[0].mxu0
        %v633 = vadd.f32 %v387, %v632
        %634 = vmatprep.mubr.f32.mxu0 %v311
        %635 = vmatmul.mubr.f32.gmra.mrb[0].mxu0 %v310
        %v636 = vpop.f32.mrb[0].mxu0
        %v637 = vadd.f32 %v383, %v636
        %v638 = vpop.f32.mrb[0].mxu0
        %v639 = vadd.f32 %v387, %v638
        %640 = vmatprep.mubr.f32.mxu0 %v313
        %641 = vmatmul.mubr.f32.gmra.mrb[0].mxu0 %v312
        %v642 = vpop.f32.mrb[0].mxu0
        %v643 = vadd.f32 %v383, %v642
        %v644 = vpop.f32.mrb[0].mxu0
        %v645 = vadd.f32 %v387, %v644
        %646 = vdwg.mxu0
        %647 = vst [vmem:[%s240] sm:$0xff] %v457
        %648 = vst [vmem:[%s240 + $0x8] sm:$0xff] %v459
        %649 = vst [vmem:[%s240 + $0x10] sm:$0xff] %v463
        %650 = vst [vmem:[%s240 + $0x18] sm:$0xff] %v465
        %651 = vst [vmem:[%s240 + $0x20] sm:$0xff] %v469
        %652 = vst [vmem:[%s240 + $0x28] sm:$0xff] %v471
        %653 = vst [vmem:[%s240 + $0x30] sm:$0xff] %v475
        %654 = vst [vmem:[%s240 + $0x38] sm:$0xff] %v477
        %655 = vst [vmem:[%s240 + $0x40] sm:$0xff] %v481
        %656 = vst [vmem:[%s240 + $0x48] sm:$0xff] %v483
        %657 = vst [vmem:[%s240 + $0x50] sm:$0xff] %v487
        %658 = vst [vmem:[%s240 + $0x58] sm:$0xff] %v489
        %659 = vst [vmem:[%s240 + $0x60] sm:$0xff] %v493
        %660 = vst [vmem:[%s240 + $0x68] sm:$0xff] %v495
        %661 = vst [vmem:[%s240 + $0x70] sm:$0xff] %v499
        %662 = vst [vmem:[%s240 + $0x78] sm:$0xff] %v501
        %663 = vst [vmem:[%s240 + $0x80] sm:$0xff] %v505
        %664 = vst [vmem:[%s240 + $0x88] sm:$0xff] %v507
        %665 = vst [vmem:[%s240 + $0x90] sm:$0xff] %v511
        %666 = vst [vmem:[%s240 + $0x98] sm:$0xff] %v513
        %667 = vst [vmem:[%s240 + $0xa0] sm:$0xff] %v517
        %668 = vst [vmem:[%s240 + $0xa8] sm:$0xff] %v519
        %669 = vst [vmem:[%s240 + $0xb0] sm:$0xff] %v523
        %670 = vst [vmem:[%s240 + $0xb8] sm:$0xff] %v525
        %671 = vst [vmem:[%s240 + $0xc0] sm:$0xff] %v529
        %672 = vst [vmem:[%s240 + $0xc8] sm:$0xff] %v531
        %673 = vst [vmem:[%s240 + $0xd0] sm:$0xff] %v535
        %674 = vst [vmem:[%s240 + $0xd8] sm:$0xff] %v537
        %675 = vst [vmem:[%s240 + $0xe0] sm:$0xff] %v541
        %676 = vst [vmem:[%s240 + $0xe8] sm:$0xff] %v543
        %677 = vst [vmem:[%s240 + $0xf0] sm:$0xff] %v547
        %678 = vst [vmem:[%s240 + $0xf8] sm:$0xff] %v549
        %679 = vst [vmem:[%s240 + $0x100] sm:$0xff] %v553
        %680 = vst [vmem:[%s240 + $0x108] sm:$0xff] %v555
        %681 = vst [vmem:[%s240 + $0x110] sm:$0xff] %v559
        %682 = vst [vmem:[%s240 + $0x118] sm:$0xff] %v561
        %683 = vst [vmem:[%s240 + $0x120] sm:$0xff] %v565
        %684 = vst [vmem:[%s240 + $0x128] sm:$0xff] %v567
        %685 = vst [vmem:[%s240 + $0x130] sm:$0xff] %v571
        %686 = vst [vmem:[%s240 + $0x138] sm:$0xff] %v573
        %687 = vst [vmem:[%s240 + $0x140] sm:$0xff] %v577
        %688 = vst [vmem:[%s240 + $0x148] sm:$0xff] %v579
        %689 = vst [vmem:[%s240 + $0x150] sm:$0xff] %v583
        %690 = vst [vmem:[%s240 + $0x158] sm:$0xff] %v585
        %691 = vst [vmem:[%s240 + $0x160] sm:$0xff] %v589
        %692 = vst [vmem:[%s240 + $0x168] sm:$0xff] %v591
        %693 = vst [vmem:[%s240 + $0x170] sm:$0xff] %v595
        %694 = vst [vmem:[%s240 + $0x178] sm:$0xff] %v597
        %695 = vst [vmem:[%s240 + $0x180] sm:$0xff] %v601
        %696 = vst [vmem:[%s240 + $0x188] sm:$0xff] %v603
        %697 = vst [vmem:[%s240 + $0x190] sm:$0xff] %v607
        %698 = vst [vmem:[%s240 + $0x198] sm:$0xff] %v609
        %699 = vst [vmem:[%s240 + $0x1a0] sm:$0xff] %v613
        %700 = vst [vmem:[%s240 + $0x1a8] sm:$0xff] %v615
        %701 = vst [vmem:[%s240 + $0x1b0] sm:$0xff] %v619
        %702 = vst [vmem:[%s240 + $0x1b8] sm:$0xff] %v621
        %703 = vst [vmem:[%s240 + $0x1c0] sm:$0xff] %v625
        %704 = vst [vmem:[%s240 + $0x1c8] sm:$0xff] %v627
        %705 = vst [vmem:[%s240 + $0x1d0] sm:$0xff] %v631
        %706 = vst [vmem:[%s240 + $0x1d8] sm:$0xff] %v633
        %707 = vst [vmem:[%s240 + $0x1e0] sm:$0xff] %v637
        %708 = vst [vmem:[%s240 + $0x1e8] sm:$0xff] %v639
        %709 = vst [vmem:[%s240 + $0x1f0] sm:$0xff] %v643
        %710 = vst [vmem:[%s240 + $0x1f8] sm:$0xff] %v645
        %s711 = sand.u32 %s121, 1
        %s712 = scalar_lea.sflag [#allocation4], %s711
        %s713 = sand.u32 %s121, 1
        %s714 = smul.addr %s713, 512
        %s715 = scalar_lea.vmem [#allocation7], %s714
        // Predicated region
        $region41: #{tpu_custom_call.1} parent=31 // pred_check
          %p716 = pneg %p131
        $region42: #{tpu_custom_call.1} parent=31 // pred_check_branch
          %718 = sbr.rel (%p716) target = $region44
        $region43: #{tpu_custom_call.1} parent=31 // pred_region
          %s719 = smul.u32 32, %s25
          %s720 = smul.u32 2, %s26
          %s722 = ssub.s32 8192, 8192
          %723 = vsyncadd %s712, %s722
          %s724 = smul.addr %s719, 6
          %s725 = sadd.s32 %s720, %s724
          %s726 = smul.addr %s725, 128
          %s727 = scalar_lea.hbm %s3, %s726
          %s728 = sshll.u32 %s715, 4
          %s729 = int_to_ptr.vmem [resolvable:$true] %s728
          %734 = dma.vmem_to_hbm [thread:$0]  %s729, 8192, %s727, %s712, 256, 768, 16
        $region44: #{tpu_custom_call.1} parent=31 // pred_fallthru
          _
      $region32: #{tpu_custom_call.1} parent=5 // pred_fallthru
        _
      %p735 = scmp.le.s32.totalorder 2, %s16
      // Predicated region
      $region45: #{tpu_custom_call.1} parent=5 // pred_check
        %p736 = pneg %p735
      $region46: #{tpu_custom_call.1} parent=5 // pred_check_branch
        %738 = sbr.rel (%p736) target = $region48
      $region47: #{tpu_custom_call.1} parent=5 // pred_region
        %s739 = ssub.s32 %s16, 2
        // Predicated region
        $region49: #{tpu_custom_call.1} parent=47 // pred_check
          %p740 = pneg %p137
        $region50: #{tpu_custom_call.1} parent=47 // pred_check_branch
          %742 = sbr.rel (%p740) target = $region52
        $region51: #{tpu_custom_call.1} parent=47 // pred_region
          %s743 = sand.u32 %s122, 1
          %s744 = scalar_lea.sflag [#allocation4], %s743
          %s745 = sand.u32 %s122, 1
          %s746 = smul.addr %s745, 512
          %s747 = scalar_lea.vmem [#allocation7], %s746
          %748 = dma.done %s744, 8192
        $region52: #{tpu_custom_call.1} parent=47 // pred_fallthru
          _
      $region48: #{tpu_custom_call.1} parent=5 // pred_fallthru
        _
    $region6: #{tpu_custom_call.1} parent=1 // loop_footer
      %s20 = sadd.s32 1, %s16
    $region7: #{tpu_custom_call.1} parent=1 // loop_footer_branch
      %15 = sbr.rel target = $region3
    $region8: #{tpu_custom_call.1} parent=1 // loop_exit
      _
    %749 = vsyncpa [#allocation3], 1
    %s750 = scalar_lea.sflag [#allocation3], 1
    %751 = vsyncpa %s750, 1
    %752 = vsyncpa [#allocation6], 1
    %s753 = scalar_lea.sflag [#allocation6], 1
    %754 = vsyncpa %s753, 1
    %755 = vsyncpa [#allocation4], 1
    %s756 = scalar_lea.sflag [#allocation4], 1
    %757 = vsyncpa %s756, 1

</llo_original>
